<compile_context>
chip_gen: v7x
topology: tpu7x:2x2x1
jax: 0.10.0
libtpu: 0.0.40
codegen_flags: <defaults>
</compile_context>

<pallas_src>
import jax
import jax.numpy as jnp
from jax.experimental import pallas as pl
from jax.experimental.pallas import tpu as pltpu


_LANE = 128
_SUB = 32                             # row alignment safe for f32/bf16/fp16/int8/fp8 packing
_WIDTHS = (1024, 512, 256, 128)       # lane-dense slab widths, widest first
_MIN_BLOCK_BYTES = 2 * 1024 * 1024    # target moved bytes (in + out) per grid step
_TARGET_GRID_STEPS = 8                # aim for >= 8 blocks (balanced across 2 TCs on v7x)
_SMALL_FAST_PATH_BYTES = 1 << 20      # below this, plain x.astype wins
_IN_BUFS = 3                          # budgeted pipeline depth for the input
_OUT_BUFS = 2                         # default double-buffered output


def _round_up(v, m):
    return ((v + m - 1) // m) * m


def _round_down(v, m):
    return (v // m) * m


def _vmem_budgets():
    """(block byte budget, scoped vmem_limit_bytes), generation-aware."""
    cap = None
    try:
        cap = getattr(pltpu.get_tpu_info(), "vmem_capacity_bytes", None)
    except Exception:
        cap = None
    if cap is not None and cap >= 100 * 1024 * 1024:
        # v5e / v6e: 128 MiB VMEM per TensorCore.
        return 24 * 1024 * 1024, 40 * 1024 * 1024
    # v7x (64 MiB per TC) or unknown: stay conservative.
    return 12 * 1024 * 1024, 28 * 1024 * 1024


def _cast_kernel(x_ref, o_ref):
    # Pure elementwise dtype conversion on the VPU; whole tile at once.
    o_ref[...] = x_ref[...].astype(o_ref.dtype)


def _cast_call(x2d, dtype, tile_rows, width, vmem_limit, buffered):
    rows = x2d.shape[0]
    if buffered:
        in_spec = pl.BlockSpec((tile_rows, width), lambda i: (i, 0),
                               pipeline_mode=pl.Buffered(_IN_BUFS))
    else:
        in_spec = pl.BlockSpec((tile_rows, width), lambda i: (i, 0))
    return pl.pallas_call(
        _cast_kernel,
        out_shape=jax.ShapeDtypeStruct((rows, width), dtype),
        grid=(pl.cdiv(rows, tile_rows),),
        in_specs=[in_spec],
        out_specs=pl.BlockSpec((tile_rows, width), lambda i: (i, 0)),
        compiler_params=pltpu.CompilerParams(
            dimension_semantics=("parallel",),
            vmem_limit_bytes=vmem_limit,
        ),
    )(x2d)


def pallas_cast(x, dtype):
    """Equivalent of Cast(dtype)(x): returns x converted to `dtype`."""
    dtype = jnp.dtype(dtype)
    if x.dtype == dtype:
        # Same-dtype fast path (PyTorch returns the same tensor).
        return x

    total = x.size
    per_elem_bytes = x.dtype.itemsize + dtype.itemsize

    # Small tensors: pallas_call fixed cost + reshape plumbing dominates and
    # XLA's convert is already bandwidth-optimal (and fusable with neighbors).
    if total == 0 or total * per_elem_bytes < _SMALL_FAST_PATH_BYTES:
        return x.astype(dtype)

    # Widest lane-multiple slab width that exactly divides the element count:
    # no padding pass, no output-slice pass.  Ragged last row-block is handled
    # by Pallas block masking.
    width = next((w for w in _WIDTHS if total % w == 0), None)
    if width is None:
        # No lane-dense factorization without padding; padding would cost an
        # extra full HBM read+write, so let XLA's convert handle it directly.
        return x.astype(dtype)

    rows = total // width
    x2d = x.reshape(rows, width)

    block_budget, vmem_limit = _vmem_budgets()

    # Rows per block: aim for >= _TARGET_GRID_STEPS blocks, keep each block
    # moving >= ~2 MiB of HBM traffic, and fit the pipelined buffers
    # (3x input + 2x output) inside the generation-aware VMEM budget.
    buf_bytes_per_row = width * (_IN_BUFS * x.dtype.itemsize +
                                 _OUT_BUFS * dtype.itemsize)
    max_rows = max(_SUB, _round_down(block_budget // buf_bytes_per_row, _SUB))
    min_rows = max(_SUB, _round_up(pl.cdiv(_MIN_BLOCK_BYTES,
                                           width * per_elem_bytes), _SUB))
    target_rows = max(_SUB, _round_up(pl.cdiv(rows, _TARGET_GRID_STEPS), _SUB))
    tile_rows = min(max(target_rows, min_rows), max_rows)
    if tile_rows >= rows:
        tile_rows = rows          # single full-extent block

    try:
        out2d = _cast_call(x2d, dtype, tile_rows, width, vmem_limit,
                           buffered=True)
    except Exception:
        # jax version without BlockSpec pipeline_mode: default double-buffer.
        out2d = _cast_call(x2d, dtype, tile_rows, width, vmem_limit,
                           buffered=False)

    return out2d.reshape(x.shape)


class Cast:
    """JAX/Pallas analogue of the PyTorch Cast module."""

    def __init__(self, dtype):
        self._dtype = jnp.dtype(dtype)

    def __call__(self, x):
        return pallas_cast(x, self._dtype)


if __name__ == "__main__":
    key = jax.random.PRNGKey(0)

    # Small NCHW-style input (small-tensor fast path: plain convert).
    x = jax.random.normal(key, (2, 4, 16, 16), dtype=jnp.float32)
    y = jax.block_until_ready(Cast(jnp.bfloat16)(x))
    assert y.shape == x.shape and y.dtype == jnp.bfloat16
    assert jnp.array_equal(y, x.astype(jnp.bfloat16)), "f32->bf16 cast mismatch"

    # Same-dtype path returns the input unchanged.
    z = jax.block_until_ready(Cast(jnp.float32)(x))
    assert z.dtype == jnp.float32 and jnp.array_equal(z, x)

    # Larger 2D input: exercises the Pallas path with a multi-block grid and
    # a masked ragged last row-block (1024 rows / 352-row tiles).
    x2 = jax.random.normal(jax.random.PRNGKey(0), (1024, 1024),
                           dtype=jnp.bfloat16)
    y2 = jax.block_until_ready(Cast(jnp.float32)(x2))
    assert y2.dtype == jnp.float32 and y2.shape == x2.shape
    assert jnp.array_equal(y2, x2.astype(jnp.float32)), "bf16->f32 cast mismatch"

    # Ragged total (not a multiple of 128): clean astype fallback, no padding.
    x3 = jax.random.normal(jax.random.PRNGKey(0), (3, 5, 7), dtype=jnp.float32)
    y3 = jax.block_until_ready(Cast(jnp.bfloat16)(x3))
    assert y3.dtype == jnp.bfloat16 and jnp.array_equal(y3, x3.astype(jnp.bfloat16))

    print("KERNEL_OK")
</pallas_src>

<mosaic_0001>
module attributes {stable_mosaic.version = 11 : i64} {
  func.func @_cast_kernel(%arg0: i32, %arg1: memref<352x1024xbf16, #tpu.memory_space<vmem>>, %arg2: memref<352x1024xf32, #tpu.memory_space<vmem>>) attributes {dimension_semantics = [#tpu.dimension_semantics<parallel>], iteration_bounds = array<i64: 3>, scalar_prefetch = 0 : i64, scratch_operands = 0 : i64, tpu.core_type = #tpu.core_type<tc>, window_params = [{transform_indices = @transform_0, window_bounds = array<i64: 352, 1024>}, {transform_indices = @transform_1, window_bounds = array<i64: 352, 1024>}]} {
    %c0 = arith.constant 0 : index
    %c0_0 = arith.constant 0 : index
    %0 = vector.load %arg1[%c0, %c0_0] : memref<352x1024xbf16, #tpu.memory_space<vmem>>, vector<352x1024xbf16>
    %1 = arith.extf %0 : vector<352x1024xbf16> to vector<352x1024xf32>
    %c0_1 = arith.constant 0 : index
    %c0_2 = arith.constant 0 : index
    %2 = vector.load %arg2[%c0_1, %c0_2] : memref<352x1024xf32, #tpu.memory_space<vmem>>, vector<352x1024xf32>
    tpu.vector_store %arg2[%c0_1, %c0_2], %1 {strides = array<i32>} : memref<352x1024xf32, #tpu.memory_space<vmem>>, vector<352x1024xf32>,
    return
  }
  func.func @transform_0(%arg0: i32) -> (i32, i32) {
    %c0_i32 = arith.constant 0 : i32
    %c0_i32_0 = arith.constant 0 : i32
    return %arg0, %c0_i32 : i32, i32
  }
  func.func @transform_1(%arg0: i32) -> (i32, i32) {
    %c0_i32 = arith.constant 0 : i32
    %c0_i32_0 = arith.constant 0 : i32
    return %arg0, %c0_i32 : i32, i32
  }
}

</mosaic_0001>

<llo_original>
// kernel: tpu_custom_call.1
$region0: #{tpu_custom_call.1}
  #allocation0 [shape = 'u32[]', space=smem, size = 0x4, offset = 0x4, fixed_abs, tag = 'smem constant byte address 0x4 - core index']
  #allocation1 [shape = 'u32[144,128]{1,0:T(1,128)}', space=vmem, size = 0x12000, scoped, tag = 'internal scratch']
  %s0 = inlined_call_operand.hbm [shape: bf16[1024,1024], index: 0, kind: input, shape index: {}]
  %s1 = inlined_call_operand.hbm [shape: f32[1024,1024], index: 1, kind: output, shape index: {}]
  %s2 = sld [smem:[#allocation0]]
  $region41: #{tpu_custom_call.1} parent=0
    _
  %s4 = ssub.s32 1, %s2
  %s5 = scalar_select 0, %s4, %s2
  $region1: #{tpu_custom_call.1} parent=0
    #allocation2 [shape = 'u8[1441792]{0}', space=vmem, size = 0x160000, scoped, tag = 'input window, operand 0']
    #allocation3 [shape = 's32[2]{0}', space=sflag, size = 0x8, scoped, tag = 'scoped memory for tpu_custom_call.1']
    #allocation4 [shape = 's32[2]{0}', space=sflag, size = 0x8, scoped, tag = 'scoped memory for tpu_custom_call.1']
    #allocation5 [shape = 'u8[2883584]{0}', space=vmem, size = 0x2c0000, scoped, tag = 'output window, operand 0']
    %6 = vsyncpa [#allocation3], 0
    %s7 = scalar_lea.sflag [#allocation3], 1
    %8 = vsyncpa %s7, 0
    %9 = vsyncpa [#allocation4], 0
    %s10 = scalar_lea.sflag [#allocation4], 1
    %11 = vsyncpa %s10, 0
    loop: start=0, step=1, limit=5
    $region2: #{tpu_custom_call.1} parent=1 // loop_pre_header
      _
    $region3: #{tpu_custom_call.1} parent=1 // loop_header
      %s13 = sphi 0, %s17
      %p14 = scmp.ge.s32.totalorder %s13, 5
      %s23 = sphi 0, %s25
      %s26 = sphi 0, %s23
      %s27 = sphi 0, %s26
      %s43 = sphi 0, %s27
      %s49 = sphi 0, %s51
      %s52 = sphi 0, %s49
      %s53 = sphi 0, %s52
      %s69 = sphi 0, %s53
    $region4: #{tpu_custom_call.1} parent=1 // loop_header_branch
      %16 = sbr.rel (%p14) target = $region8
    $region5: #{tpu_custom_call.1} parent=1 // loop_body
      %s18 = ssub.s32 %s13, 1
      %s19 = ssub.s32 %s13, 2
      %s20 = sadd.s32 %s13, 1
      %s21 = ssub.s32 %s13, %s20
      %p22 = scmp.eq.s32.totalorder %s21, 0
      %s24 = sadd.s32 %s23, 1
      %s25 = scalar_select %p22, %s23, %s24
      %p28 = pneg %p22
      %p29 = scmp.eq.s32.totalorder %s13, 2
      %p30 = por %p28, %p29
      %p31 = scmp.ne.s32.totalorder %s23, %s26
      %p32 = scmp.eq.s32.totalorder %s13, 0
      %p33 = por %p31, %p32
      %p34 = scmp.ne.s32.totalorder %s23, %s26
      %p35 = scmp.eq.s32.totalorder %s18, 2
      %p36 = por %p34, %p35
      %p37 = scmp.ne.s32.totalorder %s26, %s27
      %p38 = scmp.eq.s32.totalorder %s18, 0
      %p39 = por %p37, %p38
      %p40 = scmp.ne.s32.totalorder %s26, %s27
      %p41 = scmp.eq.s32.totalorder %s19, 2
      %p42 = por %p40, %p41
      %p44 = scmp.ne.s32.totalorder %s27, %s43
      %p45 = scmp.eq.s32.totalorder %s19, 0
      %p46 = por %p44, %p45
      %s47 = ssub.s32 %s13, %s20
      %p48 = scmp.eq.s32.totalorder %s47, 0
      %s50 = sadd.s32 %s49, 1
      %s51 = scalar_select %p48, %s49, %s50
      %p54 = pneg %p48
      %p55 = scmp.eq.s32.totalorder %s13, 2
      %p56 = por %p54, %p55
      %p57 = scmp.ne.s32.totalorder %s49, %s52
      %p58 = scmp.eq.s32.totalorder %s13, 0
      %p59 = por %p57, %p58
      %p60 = scmp.ne.s32.totalorder %s49, %s52
      %p61 = scmp.eq.s32.totalorder %s18, 2
      %p62 = por %p60, %p61
      %p63 = scmp.ne.s32.totalorder %s52, %s53
      %p64 = scmp.eq.s32.totalorder %s18, 0
      %p65 = por %p63, %p64
      %p66 = scmp.ne.s32.totalorder %s52, %s53
      %p67 = scmp.eq.s32.totalorder %s19, 2
      %p68 = por %p66, %p67
      %p70 = scmp.ne.s32.totalorder %s53, %s69
      %p71 = scmp.eq.s32.totalorder %s19, 0
      %p72 = por %p70, %p71
      %p73 = scmp.le.s32.totalorder 1, %s13
      %p74 = scmp.lt.s32.totalorder %s13, 4
      %p75 = pnand %p73, %p74
      %p76 = pneg %p75
      // Predicated region
      $region9: #{tpu_custom_call.1} parent=5 // pred_check
        _
      $region10: #{tpu_custom_call.1} parent=5 // pred_check_branch
        %78 = sbr.rel (%p75) target = $region12
      $region11: #{tpu_custom_call.1} parent=5 // pred_region
        %s79 = ssub.s32 %s13, 1
      $region12: #{tpu_custom_call.1} parent=5 // pred_fallthru
        _
      %p80 = scmp.lt.s32.totalorder %s13, 3
      // Predicated region
      $region13: #{tpu_custom_call.1} parent=5 // pred_check
        %p81 = pneg %p80
      $region14: #{tpu_custom_call.1} parent=5 // pred_check_branch
        %83 = sbr.rel (%p81) target = $region16
      $region15: #{tpu_custom_call.1} parent=5 // pred_region
        // Predicated region
        $region17: #{tpu_custom_call.1} parent=15 // pred_check
          %p84 = pneg %p33
        $region18: #{tpu_custom_call.1} parent=15 // pred_check_branch
          %86 = sbr.rel (%p84) target = $region20
        $region19: #{tpu_custom_call.1} parent=15 // pred_region
          %s87 = sand.u32 %s23, 1
          %s88 = scalar_lea.sflag [#allocation3], %s87
          %s89 = sand.u32 %s23, 1
          %s90 = smul.addr %s89, 1408
          %s91 = scalar_lea.vmem [#allocation2], %s90
          %s92 = smul.u32 44, %s13
          %s93 = ssub.s32 128, %s92
          %p94 = scmp.lt.s32.totalorder %s93, 44
          %s95 = scalar_select %p94, %s93, 44
          %s96 = smul.u32 64, %s95
          %s97 = smul.u32 %s96, 8
          %s99 = ssub.s32 22528, %s97
          %100 = vsyncadd %s88, %s99
          %p101 = scmp.ne.s32.totalorder 0, %s97
          %s102 = smul.addr %s92, 8
          %s103 = smul.addr %s102, 64
          %s104 = scalar_lea.hbm %s0, %s103
          %s105 = smul.u32 32, %s95
          %s106 = sshll.u32 %s91, 4
          %s107 = int_to_ptr.vmem [resolvable:$true] %s106
          %s108 = sshll.u32 %s105, 4
          %112 = dma.hbm_to_vmem [thread:$0]  (%p101), %s104, %s108, %s107, %s88, 512, 512, 32
        $region20: #{tpu_custom_call.1} parent=15 // pred_fallthru
          _
      $region16: #{tpu_custom_call.1} parent=5 // pred_fallthru
        _
      %p113 = scmp.le.s32.totalorder 1, %s13
      %p114 = scmp.lt.s32.totalorder %s13, 4
      %p115 = pnand %p113, %p114
      %p116 = pneg %p115
      // Predicated region
      $region21: #{tpu_custom_call.1} parent=5 // pred_check
        _
      $region22: #{tpu_custom_call.1} parent=5 // pred_check_branch
        %118 = sbr.rel (%p115) target = $region24
      $region23: #{tpu_custom_call.1} parent=5 // pred_region
        %s119 = ssub.s32 %s13, 1
        %s120 = sand.u32 %s26, 1
        %s121 = scalar_lea.sflag [#allocation3], %s120
        %s122 = sand.u32 %s26, 1
        %s123 = smul.addr %s122, 1408
        %s124 = scalar_lea.vmem [#allocation2], %s123
        // Predicated region
        $region25: #{tpu_custom_call.1} parent=23 // pred_check
          %p125 = pneg %p39
        $region26: #{tpu_custom_call.1} parent=23 // pred_check_branch
          %127 = sbr.rel (%p125) target = $region28
        $region27: #{tpu_custom_call.1} parent=23 // pred_region
          %128 = dma.done %s121, 22528
        $region28: #{tpu_custom_call.1} parent=23 // pred_fallthru
          _
        %s129 = sand.u32 %s26, 1
        %s130 = scalar_lea.sflag [#allocation3], %s129
        %s131 = sand.u32 %s26, 1
        %s132 = smul.addr %s131, 1408
        %s133 = scalar_lea.vmem [#allocation2], %s132
        %p134 = pneg %p39
        %p135 = pneg %p36
        %p136 = pneg %p65
        %p137 = pneg %p62
        %s138 = sand.u32 %s52, 1
        %s139 = scalar_lea.sflag [#allocation4], %s138
        %s140 = sand.u32 %s52, 1
        %s141 = smul.addr %s140, 2816
        %s142 = scalar_lea.vmem [#allocation5], %s141
        %s143 = smul.u32 44, %s18
        %s144 = ssub.s32 128, %s143
        %p145 = scmp.lt.s32.totalorder %s144, 44
        %s146 = scalar_select %p145, %s144, 44
        %s147 = smul.u32 64, %s146
        %s148 = smul.u32 %s147, 8
        %s149 = smul.u32 44, %s18
        %s150 = ssub.s32 128, %s149
        %p151 = scmp.lt.s32.totalorder %s150, 44
        %s152 = scalar_select %p151, %s150, 44
        %s153 = smul.u32 128, %s152
        %s154 = smul.u32 %s153, 8
        %v155 = vld [vmem:[%s124] sm:$0xff]
        %v156 = vld [vmem:[%s124 + $0x8] sm:$0xff]
        %v157 = vld [vmem:[%s124 + $0x10] sm:$0xff]
        %v158 = vld [vmem:[%s124 + $0x18] sm:$0xff]
        %v159 = vld [vmem:[%s124 + $0x20] sm:$0xff]
        %v160 = vld [vmem:[%s124 + $0x28] sm:$0xff]
        %v161 = vld [vmem:[%s124 + $0x30] sm:$0xff]
        %v162 = vld [vmem:[%s124 + $0x38] sm:$0xff]
        %v163 = vld [vmem:[%s124 + $0x40] sm:$0xff]
        %v164 = vld [vmem:[%s124 + $0x48] sm:$0xff]
        %v165 = vld [vmem:[%s124 + $0x50] sm:$0xff]
        %v166 = vld [vmem:[%s124 + $0x58] sm:$0xff]
        %v167 = vld [vmem:[%s124 + $0x60] sm:$0xff]
        %v168 = vld [vmem:[%s124 + $0x68] sm:$0xff]
        %v169 = vld [vmem:[%s124 + $0x70] sm:$0xff]
        %v170 = vld [vmem:[%s124 + $0x78] sm:$0xff]
        %v171 = vld [vmem:[%s124 + $0x80] sm:$0xff]
        %v172 = vld [vmem:[%s124 + $0x88] sm:$0xff]
        %v173 = vld [vmem:[%s124 + $0x90] sm:$0xff]
        %v174 = vld [vmem:[%s124 + $0x98] sm:$0xff]
        %v175 = vld [vmem:[%s124 + $0xa0] sm:$0xff]
        %v176 = vld [vmem:[%s124 + $0xa8] sm:$0xff]
        %v177 = vld [vmem:[%s124 + $0xb0] sm:$0xff]
        %v178 = vld [vmem:[%s124 + $0xb8] sm:$0xff]
        %v179 = vld [vmem:[%s124 + $0xc0] sm:$0xff]
        %v180 = vld [vmem:[%s124 + $0xc8] sm:$0xff]
        %v181 = vld [vmem:[%s124 + $0xd0] sm:$0xff]
        %v182 = vld [vmem:[%s124 + $0xd8] sm:$0xff]
        %v183 = vld [vmem:[%s124 + $0xe0] sm:$0xff]
        %v184 = vld [vmem:[%s124 + $0xe8] sm:$0xff]
        %v185 = vld [vmem:[%s124 + $0xf0] sm:$0xff]
        %v186 = vld [vmem:[%s124 + $0xf8] sm:$0xff]
        %v187 = vld [vmem:[%s124 + $0x100] sm:$0xff]
        %v188 = vld [vmem:[%s124 + $0x108] sm:$0xff]
        %v189 = vld [vmem:[%s124 + $0x110] sm:$0xff]
        %v190 = vld [vmem:[%s124 + $0x118] sm:$0xff]
        %v191 = vld [vmem:[%s124 + $0x120] sm:$0xff]
        %v192 = vld [vmem:[%s124 + $0x128] sm:$0xff]
        %v193 = vld [vmem:[%s124 + $0x130] sm:$0xff]
        %v194 = vld [vmem:[%s124 + $0x138] sm:$0xff]
        %v195 = vld [vmem:[%s124 + $0x140] sm:$0xff]
        %v196 = vld [vmem:[%s124 + $0x148] sm:$0xff]
        %v197 = vld [vmem:[%s124 + $0x150] sm:$0xff]
        %v198 = vld [vmem:[%s124 + $0x158] sm:$0xff]
        %v199 = vld [vmem:[%s124 + $0x160] sm:$0xff]
        %v200 = vld [vmem:[%s124 + $0x168] sm:$0xff]
        %v201 = vld [vmem:[%s124 + $0x170] sm:$0xff]
        %v202 = vld [vmem:[%s124 + $0x178] sm:$0xff]
        %v203 = vld [vmem:[%s124 + $0x180] sm:$0xff]
        %v204 = vld [vmem:[%s124 + $0x188] sm:$0xff]
        %v205 = vld [vmem:[%s124 + $0x190] sm:$0xff]
        %v206 = vld [vmem:[%s124 + $0x198] sm:$0xff]
        %v207 = vld [vmem:[%s124 + $0x1a0] sm:$0xff]
        %v208 = vld [vmem:[%s124 + $0x1a8] sm:$0xff]
        %v209 = vld [vmem:[%s124 + $0x1b0] sm:$0xff]
        %v210 = vld [vmem:[%s124 + $0x1b8] sm:$0xff]
        %v211 = vld [vmem:[%s124 + $0x1c0] sm:$0xff]
        %v212 = vld [vmem:[%s124 + $0x1c8] sm:$0xff]
        %v213 = vld [vmem:[%s124 + $0x1d0] sm:$0xff]
        %v214 = vld [vmem:[%s124 + $0x1d8] sm:$0xff]
        %v215 = vld [vmem:[%s124 + $0x1e0] sm:$0xff]
        %v216 = vld [vmem:[%s124 + $0x1e8] sm:$0xff]
        %v217 = vld [vmem:[%s124 + $0x1f0] sm:$0xff]
        %v218 = vld [vmem:[%s124 + $0x1f8] sm:$0xff]
        %v219 = vld [vmem:[%s124 + $0x200] sm:$0xff]
        %v220 = vld [vmem:[%s124 + $0x208] sm:$0xff]
        %v221 = vld [vmem:[%s124 + $0x210] sm:$0xff]
        %v222 = vld [vmem:[%s124 + $0x218] sm:$0xff]
        %v223 = vld [vmem:[%s124 + $0x220] sm:$0xff]
        %v224 = vld [vmem:[%s124 + $0x228] sm:$0xff]
        %v225 = vld [vmem:[%s124 + $0x230] sm:$0xff]
        %v226 = vld [vmem:[%s124 + $0x238] sm:$0xff]
        %v227 = vld [vmem:[%s124 + $0x240] sm:$0xff]
        %v228 = vld [vmem:[%s124 + $0x248] sm:$0xff]
        %v229 = vld [vmem:[%s124 + $0x250] sm:$0xff]
        %v230 = vld [vmem:[%s124 + $0x258] sm:$0xff]
        %v231 = vld [vmem:[%s124 + $0x260] sm:$0xff]
        %v232 = vld [vmem:[%s124 + $0x268] sm:$0xff]
        %v233 = vld [vmem:[%s124 + $0x270] sm:$0xff]
        %v234 = vld [vmem:[%s124 + $0x278] sm:$0xff]
        %v235 = vld [vmem:[%s124 + $0x280] sm:$0xff]
        %v236 = vld [vmem:[%s124 + $0x288] sm:$0xff]
        %v237 = vld [vmem:[%s124 + $0x290] sm:$0xff]
        %v238 = vld [vmem:[%s124 + $0x298] sm:$0xff]
        %v239 = vld [vmem:[%s124 + $0x2a0] sm:$0xff]
        %v240 = vld [vmem:[%s124 + $0x2a8] sm:$0xff]
        %v241 = vld [vmem:[%s124 + $0x2b0] sm:$0xff]
        %v242 = vld [vmem:[%s124 + $0x2b8] sm:$0xff]
        %v243 = vld [vmem:[%s124 + $0x2c0] sm:$0xff]
        %v244 = vld [vmem:[%s124 + $0x2c8] sm:$0xff]
        %v245 = vld [vmem:[%s124 + $0x2d0] sm:$0xff]
        %v246 = vld [vmem:[%s124 + $0x2d8] sm:$0xff]
        %v247 = vld [vmem:[%s124 + $0x2e0] sm:$0xff]
        %v248 = vld [vmem:[%s124 + $0x2e8] sm:$0xff]
        %v249 = vld [vmem:[%s124 + $0x2f0] sm:$0xff]
        %v250 = vld [vmem:[%s124 + $0x2f8] sm:$0xff]
        %v251 = vld [vmem:[%s124 + $0x300] sm:$0xff]
        %v252 = vld [vmem:[%s124 + $0x308] sm:$0xff]
        %v253 = vld [vmem:[%s124 + $0x310] sm:$0xff]
        %v254 = vld [vmem:[%s124 + $0x318] sm:$0xff]
        %v255 = vld [vmem:[%s124 + $0x320] sm:$0xff]
        %v256 = vld [vmem:[%s124 + $0x328] sm:$0xff]
        %v257 = vld [vmem:[%s124 + $0x330] sm:$0xff]
        %v258 = vld [vmem:[%s124 + $0x338] sm:$0xff]
        %v259 = vld [vmem:[%s124 + $0x340] sm:$0xff]
        %v260 = vld [vmem:[%s124 + $0x348] sm:$0xff]
        %v261 = vld [vmem:[%s124 + $0x350] sm:$0xff]
        %v262 = vld [vmem:[%s124 + $0x358] sm:$0xff]
        %v263 = vld [vmem:[%s124 + $0x360] sm:$0xff]
        %v264 = vld [vmem:[%s124 + $0x368] sm:$0xff]
        %v265 = vld [vmem:[%s124 + $0x370] sm:$0xff]
        %v266 = vld [vmem:[%s124 + $0x378] sm:$0xff]
        %v267 = vld [vmem:[%s124 + $0x380] sm:$0xff]
        %v268 = vld [vmem:[%s124 + $0x388] sm:$0xff]
        %v269 = vld [vmem:[%s124 + $0x390] sm:$0xff]
        %v270 = vld [vmem:[%s124 + $0x398] sm:$0xff]
        %v271 = vld [vmem:[%s124 + $0x3a0] sm:$0xff]
        %v272 = vld [vmem:[%s124 + $0x3a8] sm:$0xff]
        %v273 = vld [vmem:[%s124 + $0x3b0] sm:$0xff]
        %v274 = vld [vmem:[%s124 + $0x3b8] sm:$0xff]
        %v275 = vld [vmem:[%s124 + $0x3c0] sm:$0xff]
        %v276 = vld [vmem:[%s124 + $0x3c8] sm:$0xff]
        %v277 = vld [vmem:[%s124 + $0x3d0] sm:$0xff]
        %v278 = vld [vmem:[%s124 + $0x3d8] sm:$0xff]
        %v279 = vld [vmem:[%s124 + $0x3e0] sm:$0xff]
        %v280 = vld [vmem:[%s124 + $0x3e8] sm:$0xff]
        %v281 = vld [vmem:[%s124 + $0x3f0] sm:$0xff]
        %v282 = vld [vmem:[%s124 + $0x3f8] sm:$0xff]
        %v283 = vld [vmem:[%s124 + $0x400] sm:$0xff]
        %v284 = vld [vmem:[%s124 + $0x408] sm:$0xff]
        %v285 = vld [vmem:[%s124 + $0x410] sm:$0xff]
        %v286 = vld [vmem:[%s124 + $0x418] sm:$0xff]
        %v287 = vld [vmem:[%s124 + $0x420] sm:$0xff]
        %v288 = vld [vmem:[%s124 + $0x428] sm:$0xff]
        %v289 = vld [vmem:[%s124 + $0x430] sm:$0xff]
        %v290 = vld [vmem:[%s124 + $0x438] sm:$0xff]
        %v291 = vld [vmem:[%s124 + $0x440] sm:$0xff]
        %v292 = vld [vmem:[%s124 + $0x448] sm:$0xff]
        %v293 = vld [vmem:[%s124 + $0x450] sm:$0xff]
        %v294 = vld [vmem:[%s124 + $0x458] sm:$0xff]
        %v295 = vld [vmem:[%s124 + $0x460] sm:$0xff]
        %v296 = vld [vmem:[%s124 + $0x468] sm:$0xff]
        %v297 = vld [vmem:[%s124 + $0x470] sm:$0xff]
        %v298 = vld [vmem:[%s124 + $0x478] sm:$0xff]
        %v299 = vld [vmem:[%s124 + $0x480] sm:$0xff]
        %v300 = vld [vmem:[%s124 + $0x488] sm:$0xff]
        %v301 = vld [vmem:[%s124 + $0x490] sm:$0xff]
        %v302 = vld [vmem:[%s124 + $0x498] sm:$0xff]
        %v303 = vld [vmem:[%s124 + $0x4a0] sm:$0xff]
        %v304 = vld [vmem:[%s124 + $0x4a8] sm:$0xff]
        %v305 = vld [vmem:[%s124 + $0x4b0] sm:$0xff]
        %v306 = vld [vmem:[%s124 + $0x4b8] sm:$0xff]
        %v307 = vld [vmem:[%s124 + $0x4c0] sm:$0xff]
        %v308 = vld [vmem:[%s124 + $0x4c8] sm:$0xff]
        %v309 = vld [vmem:[%s124 + $0x4d0] sm:$0xff]
        %v310 = vld [vmem:[%s124 + $0x4d8] sm:$0xff]
        %v311 = vld [vmem:[%s124 + $0x4e0] sm:$0xff]
        %v312 = vld [vmem:[%s124 + $0x4e8] sm:$0xff]
        %v313 = vld [vmem:[%s124 + $0x4f0] sm:$0xff]
        %v314 = vld [vmem:[%s124 + $0x4f8] sm:$0xff]
        %v315 = vld [vmem:[%s124 + $0x500] sm:$0xff]
        %v316 = vld [vmem:[%s124 + $0x508] sm:$0xff]
        %v317 = vld [vmem:[%s124 + $0x510] sm:$0xff]
        %v318 = vld [vmem:[%s124 + $0x518] sm:$0xff]
        %v319 = vld [vmem:[%s124 + $0x520] sm:$0xff]
        %v320 = vld [vmem:[%s124 + $0x528] sm:$0xff]
        %v321 = vld [vmem:[%s124 + $0x530] sm:$0xff]
        %v322 = vld [vmem:[%s124 + $0x538] sm:$0xff]
        %v323 = vld [vmem:[%s124 + $0x540] sm:$0xff]
        %v324 = vld [vmem:[%s124 + $0x548] sm:$0xff]
        %v325 = vld [vmem:[%s124 + $0x550] sm:$0xff]
        %v326 = vld [vmem:[%s124 + $0x558] sm:$0xff]
        %v327 = vld [vmem:[%s124 + $0x560] sm:$0xff]
        %v328 = vld [vmem:[%s124 + $0x568] sm:$0xff]
        %v329 = vld [vmem:[%s124 + $0x570] sm:$0xff]
        %v330 = vld [vmem:[%s124 + $0x578] sm:$0xff]
        %v331 = vunpack.c.l.bf16 %v155
        %v332 = vunpack.c.h.bf16 %v155
        %v333 = vunpack.c.l.bf16 %v156
        %v334 = vunpack.c.h.bf16 %v156
        %v335 = vunpack.c.l.bf16 %v157
        %v336 = vunpack.c.h.bf16 %v157
        %v337 = vunpack.c.l.bf16 %v158
        %v338 = vunpack.c.h.bf16 %v158
        %v339 = vunpack.c.l.bf16 %v159
        %v340 = vunpack.c.h.bf16 %v159
        %v341 = vunpack.c.l.bf16 %v160
        %v342 = vunpack.c.h.bf16 %v160
        %v343 = vunpack.c.l.bf16 %v161
        %v344 = vunpack.c.h.bf16 %v161
        %v345 = vunpack.c.l.bf16 %v162
        %v346 = vunpack.c.h.bf16 %v162
        %v347 = vunpack.c.l.bf16 %v163
        %v348 = vunpack.c.h.bf16 %v163
        %v349 = vunpack.c.l.bf16 %v164
        %v350 = vunpack.c.h.bf16 %v164
        %v351 = vunpack.c.l.bf16 %v165
        %v352 = vunpack.c.h.bf16 %v165
        %v353 = vunpack.c.l.bf16 %v166
        %v354 = vunpack.c.h.bf16 %v166
        %v355 = vunpack.c.l.bf16 %v167
        %v356 = vunpack.c.h.bf16 %v167
        %v357 = vunpack.c.l.bf16 %v168
        %v358 = vunpack.c.h.bf16 %v168
        %v359 = vunpack.c.l.bf16 %v169
        %v360 = vunpack.c.h.bf16 %v169
        %v361 = vunpack.c.l.bf16 %v170
        %v362 = vunpack.c.h.bf16 %v170
        %v363 = vunpack.c.l.bf16 %v171
        %v364 = vunpack.c.h.bf16 %v171
        %v365 = vunpack.c.l.bf16 %v172
        %v366 = vunpack.c.h.bf16 %v172
        %v367 = vunpack.c.l.bf16 %v173
        %v368 = vunpack.c.h.bf16 %v173
        %v369 = vunpack.c.l.bf16 %v174
        %v370 = vunpack.c.h.bf16 %v174
        %v371 = vunpack.c.l.bf16 %v175
        %v372 = vunpack.c.h.bf16 %v175
        %v373 = vunpack.c.l.bf16 %v176
        %v374 = vunpack.c.h.bf16 %v176
        %v375 = vunpack.c.l.bf16 %v177
        %v376 = vunpack.c.h.bf16 %v177
        %v377 = vunpack.c.l.bf16 %v178
        %v378 = vunpack.c.h.bf16 %v178
        %v379 = vunpack.c.l.bf16 %v179
        %v380 = vunpack.c.h.bf16 %v179
        %v381 = vunpack.c.l.bf16 %v180
        %v382 = vunpack.c.h.bf16 %v180
        %v383 = vunpack.c.l.bf16 %v181
        %v384 = vunpack.c.h.bf16 %v181
        %v385 = vunpack.c.l.bf16 %v182
        %v386 = vunpack.c.h.bf16 %v182
        %v387 = vunpack.c.l.bf16 %v183
        %v388 = vunpack.c.h.bf16 %v183
        %v389 = vunpack.c.l.bf16 %v184
        %v390 = vunpack.c.h.bf16 %v184
        %v391 = vunpack.c.l.bf16 %v185
        %v392 = vunpack.c.h.bf16 %v185
        %v393 = vunpack.c.l.bf16 %v186
        %v394 = vunpack.c.h.bf16 %v186
        %v395 = vunpack.c.l.bf16 %v187
        %v396 = vunpack.c.h.bf16 %v187
        %v397 = vunpack.c.l.bf16 %v188
        %v398 = vunpack.c.h.bf16 %v188
        %v399 = vunpack.c.l.bf16 %v189
        %v400 = vunpack.c.h.bf16 %v189
        %v401 = vunpack.c.l.bf16 %v190
        %v402 = vunpack.c.h.bf16 %v190
        %v403 = vunpack.c.l.bf16 %v191
        %v404 = vunpack.c.h.bf16 %v191
        %v405 = vunpack.c.l.bf16 %v192
        %v406 = vunpack.c.h.bf16 %v192
        %v407 = vunpack.c.l.bf16 %v193
        %v408 = vunpack.c.h.bf16 %v193
        %v409 = vunpack.c.l.bf16 %v194
        %v410 = vunpack.c.h.bf16 %v194
        %v411 = vunpack.c.l.bf16 %v195
        %v412 = vunpack.c.h.bf16 %v195
        %v413 = vunpack.c.l.bf16 %v196
        %v414 = vunpack.c.h.bf16 %v196
        %v415 = vunpack.c.l.bf16 %v197
        %v416 = vunpack.c.h.bf16 %v197
        %v417 = vunpack.c.l.bf16 %v198
        %v418 = vunpack.c.h.bf16 %v198
        %v419 = vunpack.c.l.bf16 %v199
        %v420 = vunpack.c.h.bf16 %v199
        %v421 = vunpack.c.l.bf16 %v200
        %v422 = vunpack.c.h.bf16 %v200
        %v423 = vunpack.c.l.bf16 %v201
        %v424 = vunpack.c.h.bf16 %v201
        %v425 = vunpack.c.l.bf16 %v202
        %v426 = vunpack.c.h.bf16 %v202
        %v427 = vunpack.c.l.bf16 %v203
        %v428 = vunpack.c.h.bf16 %v203
        %v429 = vunpack.c.l.bf16 %v204
        %v430 = vunpack.c.h.bf16 %v204
        %v431 = vunpack.c.l.bf16 %v205
        %v432 = vunpack.c.h.bf16 %v205
        %v433 = vunpack.c.l.bf16 %v206
        %v434 = vunpack.c.h.bf16 %v206
        %v435 = vunpack.c.l.bf16 %v207
        %v436 = vunpack.c.h.bf16 %v207
        %v437 = vunpack.c.l.bf16 %v208
        %v438 = vunpack.c.h.bf16 %v208
        %v439 = vunpack.c.l.bf16 %v209
        %v440 = vunpack.c.h.bf16 %v209
        %v441 = vunpack.c.l.bf16 %v210
        %v442 = vunpack.c.h.bf16 %v210
        %v443 = vunpack.c.l.bf16 %v211
        %v444 = vunpack.c.h.bf16 %v211
        %v445 = vunpack.c.l.bf16 %v212
        %v446 = vunpack.c.h.bf16 %v212
        %v447 = vunpack.c.l.bf16 %v213
        %v448 = vunpack.c.h.bf16 %v213
        %v449 = vunpack.c.l.bf16 %v214
        %v450 = vunpack.c.h.bf16 %v214
        %v451 = vunpack.c.l.bf16 %v215
        %v452 = vunpack.c.h.bf16 %v215
        %v453 = vunpack.c.l.bf16 %v216
        %v454 = vunpack.c.h.bf16 %v216
        %v455 = vunpack.c.l.bf16 %v217
        %v456 = vunpack.c.h.bf16 %v217
        %v457 = vunpack.c.l.bf16 %v218
        %v458 = vunpack.c.h.bf16 %v218
        %v459 = vunpack.c.l.bf16 %v219
        %v460 = vunpack.c.h.bf16 %v219
        %v461 = vunpack.c.l.bf16 %v220
        %v462 = vunpack.c.h.bf16 %v220
        %v463 = vunpack.c.l.bf16 %v221
        %v464 = vunpack.c.h.bf16 %v221
        %v465 = vunpack.c.l.bf16 %v222
        %v466 = vunpack.c.h.bf16 %v222
        %v467 = vunpack.c.l.bf16 %v223
        %v468 = vunpack.c.h.bf16 %v223
        %v469 = vunpack.c.l.bf16 %v224
        %v470 = vunpack.c.h.bf16 %v224
        %v471 = vunpack.c.l.bf16 %v225
        %v472 = vunpack.c.h.bf16 %v225
        %v473 = vunpack.c.l.bf16 %v226
        %v474 = vunpack.c.h.bf16 %v226
        %v475 = vunpack.c.l.bf16 %v227
        %v476 = vunpack.c.h.bf16 %v227
        %v477 = vunpack.c.l.bf16 %v228
        %v478 = vunpack.c.h.bf16 %v228
        %v479 = vunpack.c.l.bf16 %v229
        %v480 = vunpack.c.h.bf16 %v229
        %v481 = vunpack.c.l.bf16 %v230
        %v482 = vunpack.c.h.bf16 %v230
        %v483 = vunpack.c.l.bf16 %v231
        %v484 = vunpack.c.h.bf16 %v231
        %v485 = vunpack.c.l.bf16 %v232
        %v486 = vunpack.c.h.bf16 %v232
        %v487 = vunpack.c.l.bf16 %v233
        %v488 = vunpack.c.h.bf16 %v233
        %v489 = vunpack.c.l.bf16 %v234
        %v490 = vunpack.c.h.bf16 %v234
        %v491 = vunpack.c.l.bf16 %v235
        %v492 = vunpack.c.h.bf16 %v235
        %v493 = vunpack.c.l.bf16 %v236
        %v494 = vunpack.c.h.bf16 %v236
        %v495 = vunpack.c.l.bf16 %v237
        %v496 = vunpack.c.h.bf16 %v237
        %v497 = vunpack.c.l.bf16 %v238
        %v498 = vunpack.c.h.bf16 %v238
        %v499 = vunpack.c.l.bf16 %v239
        %v500 = vunpack.c.h.bf16 %v239
        %v501 = vunpack.c.l.bf16 %v240
        %v502 = vunpack.c.h.bf16 %v240
        %v503 = vunpack.c.l.bf16 %v241
        %v504 = vunpack.c.h.bf16 %v241
        %v505 = vunpack.c.l.bf16 %v242
        %v506 = vunpack.c.h.bf16 %v242
        %v507 = vunpack.c.l.bf16 %v243
        %v508 = vunpack.c.h.bf16 %v243
        %v509 = vunpack.c.l.bf16 %v244
        %v510 = vunpack.c.h.bf16 %v244
        %v511 = vunpack.c.l.bf16 %v245
        %v512 = vunpack.c.h.bf16 %v245
        %v513 = vunpack.c.l.bf16 %v246
        %v514 = vunpack.c.h.bf16 %v246
        %v515 = vunpack.c.l.bf16 %v247
        %v516 = vunpack.c.h.bf16 %v247
        %v517 = vunpack.c.l.bf16 %v248
        %v518 = vunpack.c.h.bf16 %v248
        %v519 = vunpack.c.l.bf16 %v249
        %v520 = vunpack.c.h.bf16 %v249
        %v521 = vunpack.c.l.bf16 %v250
        %v522 = vunpack.c.h.bf16 %v250
        %v523 = vunpack.c.l.bf16 %v251
        %v524 = vunpack.c.h.bf16 %v251
        %v525 = vunpack.c.l.bf16 %v252
        %v526 = vunpack.c.h.bf16 %v252
        %v527 = vunpack.c.l.bf16 %v253
        %v528 = vunpack.c.h.bf16 %v253
        %v529 = vunpack.c.l.bf16 %v254
        %v530 = vunpack.c.h.bf16 %v254
        %v531 = vunpack.c.l.bf16 %v255
        %v532 = vunpack.c.h.bf16 %v255
        %v533 = vunpack.c.l.bf16 %v256
        %v534 = vunpack.c.h.bf16 %v256
        %v535 = vunpack.c.l.bf16 %v257
        %v536 = vunpack.c.h.bf16 %v257
        %v537 = vunpack.c.l.bf16 %v258
        %v538 = vunpack.c.h.bf16 %v258
        %v539 = vunpack.c.l.bf16 %v259
        %v540 = vunpack.c.h.bf16 %v259
        %v541 = vunpack.c.l.bf16 %v260
        %v542 = vunpack.c.h.bf16 %v260
        %v543 = vunpack.c.l.bf16 %v261
        %v544 = vunpack.c.h.bf16 %v261
        %v545 = vunpack.c.l.bf16 %v262
        %v546 = vunpack.c.h.bf16 %v262
        %v547 = vunpack.c.l.bf16 %v263
        %v548 = vunpack.c.h.bf16 %v263
        %v549 = vunpack.c.l.bf16 %v264
        %v550 = vunpack.c.h.bf16 %v264
        %v551 = vunpack.c.l.bf16 %v265
        %v552 = vunpack.c.h.bf16 %v265
        %v553 = vunpack.c.l.bf16 %v266
        %v554 = vunpack.c.h.bf16 %v266
        %v555 = vunpack.c.l.bf16 %v267
        %v556 = vunpack.c.h.bf16 %v267
        %v557 = vunpack.c.l.bf16 %v268
        %v558 = vunpack.c.h.bf16 %v268
        %v559 = vunpack.c.l.bf16 %v269
        %v560 = vunpack.c.h.bf16 %v269
        %v561 = vunpack.c.l.bf16 %v270
        %v562 = vunpack.c.h.bf16 %v270
        %v563 = vunpack.c.l.bf16 %v271
        %v564 = vunpack.c.h.bf16 %v271
        %v565 = vunpack.c.l.bf16 %v272
        %v566 = vunpack.c.h.bf16 %v272
        %v567 = vunpack.c.l.bf16 %v273
        %v568 = vunpack.c.h.bf16 %v273
        %v569 = vunpack.c.l.bf16 %v274
        %v570 = vunpack.c.h.bf16 %v274
        %v571 = vunpack.c.l.bf16 %v275
        %v572 = vunpack.c.h.bf16 %v275
        %v573 = vunpack.c.l.bf16 %v276
        %v574 = vunpack.c.h.bf16 %v276
        %v575 = vunpack.c.l.bf16 %v277
        %v576 = vunpack.c.h.bf16 %v277
        %v577 = vunpack.c.l.bf16 %v278
        %v578 = vunpack.c.h.bf16 %v278
        %v579 = vunpack.c.l.bf16 %v279
        %v580 = vunpack.c.h.bf16 %v279
        %v581 = vunpack.c.l.bf16 %v280
        %v582 = vunpack.c.h.bf16 %v280
        %v583 = vunpack.c.l.bf16 %v281
        %v584 = vunpack.c.h.bf16 %v281
        %v585 = vunpack.c.l.bf16 %v282
        %v586 = vunpack.c.h.bf16 %v282
        %v587 = vunpack.c.l.bf16 %v283
        %v588 = vunpack.c.h.bf16 %v283
        %v589 = vunpack.c.l.bf16 %v284
        %v590 = vunpack.c.h.bf16 %v284
        %v591 = vunpack.c.l.bf16 %v285
        %v592 = vunpack.c.h.bf16 %v285
        %v593 = vunpack.c.l.bf16 %v286
        %v594 = vunpack.c.h.bf16 %v286
        %v595 = vunpack.c.l.bf16 %v287
        %v596 = vunpack.c.h.bf16 %v287
        %v597 = vunpack.c.l.bf16 %v288
        %v598 = vunpack.c.h.bf16 %v288
        %v599 = vunpack.c.l.bf16 %v289
        %v600 = vunpack.c.h.bf16 %v289
        %v601 = vunpack.c.l.bf16 %v290
        %v602 = vunpack.c.h.bf16 %v290
        %v603 = vunpack.c.l.bf16 %v291
        %v604 = vunpack.c.h.bf16 %v291
        %v605 = vunpack.c.l.bf16 %v292
        %v606 = vunpack.c.h.bf16 %v292
        %v607 = vunpack.c.l.bf16 %v293
        %v608 = vunpack.c.h.bf16 %v293
        %v609 = vunpack.c.l.bf16 %v294
        %v610 = vunpack.c.h.bf16 %v294
        %v611 = vunpack.c.l.bf16 %v295
        %v612 = vunpack.c.h.bf16 %v295
        %v613 = vunpack.c.l.bf16 %v296
        %v614 = vunpack.c.h.bf16 %v296
        %v615 = vunpack.c.l.bf16 %v297
        %v616 = vunpack.c.h.bf16 %v297
        %v617 = vunpack.c.l.bf16 %v298
        %v618 = vunpack.c.h.bf16 %v298
        %v619 = vunpack.c.l.bf16 %v299
        %v620 = vunpack.c.h.bf16 %v299
        %v621 = vunpack.c.l.bf16 %v300
        %v622 = vunpack.c.h.bf16 %v300
        %v623 = vunpack.c.l.bf16 %v301
        %v624 = vunpack.c.h.bf16 %v301
        %v625 = vunpack.c.l.bf16 %v302
        %v626 = vunpack.c.h.bf16 %v302
        %v627 = vunpack.c.l.bf16 %v303
        %v628 = vunpack.c.h.bf16 %v303
        %v629 = vunpack.c.l.bf16 %v304
        %v630 = vunpack.c.h.bf16 %v304
        %v631 = vunpack.c.l.bf16 %v305
        %v632 = vunpack.c.h.bf16 %v305
        %v633 = vunpack.c.l.bf16 %v306
        %v634 = vunpack.c.h.bf16 %v306
        %v635 = vunpack.c.l.bf16 %v307
        %v636 = vunpack.c.h.bf16 %v307
        %v637 = vunpack.c.l.bf16 %v308
        %v638 = vunpack.c.h.bf16 %v308
        %v639 = vunpack.c.l.bf16 %v309
        %v640 = vunpack.c.h.bf16 %v309
        %v641 = vunpack.c.l.bf16 %v310
        %v642 = vunpack.c.h.bf16 %v310
        %v643 = vunpack.c.l.bf16 %v311
        %v644 = vunpack.c.h.bf16 %v311
        %v645 = vunpack.c.l.bf16 %v312
        %v646 = vunpack.c.h.bf16 %v312
        %v647 = vunpack.c.l.bf16 %v313
        %v648 = vunpack.c.h.bf16 %v313
        %v649 = vunpack.c.l.bf16 %v314
        %v650 = vunpack.c.h.bf16 %v314
        %v651 = vunpack.c.l.bf16 %v315
        %v652 = vunpack.c.h.bf16 %v315
        %v653 = vunpack.c.l.bf16 %v316
        %v654 = vunpack.c.h.bf16 %v316
        %v655 = vunpack.c.l.bf16 %v317
        %v656 = vunpack.c.h.bf16 %v317
        %v657 = vunpack.c.l.bf16 %v318
        %v658 = vunpack.c.h.bf16 %v318
        %v659 = vunpack.c.l.bf16 %v319
        %v660 = vunpack.c.h.bf16 %v319
        %v661 = vunpack.c.l.bf16 %v320
        %v662 = vunpack.c.h.bf16 %v320
        %v663 = vunpack.c.l.bf16 %v321
        %v664 = vunpack.c.h.bf16 %v321
        %v665 = vunpack.c.l.bf16 %v322
        %v666 = vunpack.c.h.bf16 %v322
        %v667 = vunpack.c.l.bf16 %v323
        %v668 = vunpack.c.h.bf16 %v323
        %v669 = vunpack.c.l.bf16 %v324
        %v670 = vunpack.c.h.bf16 %v324
        %v671 = vunpack.c.l.bf16 %v325
        %v672 = vunpack.c.h.bf16 %v325
        %v673 = vunpack.c.l.bf16 %v326
        %v674 = vunpack.c.h.bf16 %v326
        %v675 = vunpack.c.l.bf16 %v327
        %v676 = vunpack.c.h.bf16 %v327
        %v677 = vunpack.c.l.bf16 %v328
        %v678 = vunpack.c.h.bf16 %v328
        %v679 = vunpack.c.l.bf16 %v329
        %v680 = vunpack.c.h.bf16 %v329
        %v681 = vunpack.c.l.bf16 %v330
        %v682 = vunpack.c.h.bf16 %v330
        %683 = vst [vmem:[%s142] sm:$0xff] %v331
        %684 = vst [vmem:[%s142 + $0x8] sm:$0xff] %v332
        %685 = vst [vmem:[%s142 + $0x10] sm:$0xff] %v333
        %686 = vst [vmem:[%s142 + $0x18] sm:$0xff] %v334
        %687 = vst [vmem:[%s142 + $0x20] sm:$0xff] %v335
        %688 = vst [vmem:[%s142 + $0x28] sm:$0xff] %v336
        %689 = vst [vmem:[%s142 + $0x30] sm:$0xff] %v337
        %690 = vst [vmem:[%s142 + $0x38] sm:$0xff] %v338
        %691 = vst [vmem:[%s142 + $0x40] sm:$0xff] %v339
        %692 = vst [vmem:[%s142 + $0x48] sm:$0xff] %v340
        %693 = vst [vmem:[%s142 + $0x50] sm:$0xff] %v341
        %694 = vst [vmem:[%s142 + $0x58] sm:$0xff] %v342
        %695 = vst [vmem:[%s142 + $0x60] sm:$0xff] %v343
        %696 = vst [vmem:[%s142 + $0x68] sm:$0xff] %v344
        %697 = vst [vmem:[%s142 + $0x70] sm:$0xff] %v345
        %698 = vst [vmem:[%s142 + $0x78] sm:$0xff] %v346
        %699 = vst [vmem:[%s142 + $0x80] sm:$0xff] %v347
        %700 = vst [vmem:[%s142 + $0x88] sm:$0xff] %v348
        %701 = vst [vmem:[%s142 + $0x90] sm:$0xff] %v349
        %702 = vst [vmem:[%s142 + $0x98] sm:$0xff] %v350
        %703 = vst [vmem:[%s142 + $0xa0] sm:$0xff] %v351
        %704 = vst [vmem:[%s142 + $0xa8] sm:$0xff] %v352
        %705 = vst [vmem:[%s142 + $0xb0] sm:$0xff] %v353
        %706 = vst [vmem:[%s142 + $0xb8] sm:$0xff] %v354
        %707 = vst [vmem:[%s142 + $0xc0] sm:$0xff] %v355
        %708 = vst [vmem:[%s142 + $0xc8] sm:$0xff] %v356
        %709 = vst [vmem:[%s142 + $0xd0] sm:$0xff] %v357
        %710 = vst [vmem:[%s142 + $0xd8] sm:$0xff] %v358
        %711 = vst [vmem:[%s142 + $0xe0] sm:$0xff] %v359
        %712 = vst [vmem:[%s142 + $0xe8] sm:$0xff] %v360
        %713 = vst [vmem:[%s142 + $0xf0] sm:$0xff] %v361
        %714 = vst [vmem:[%s142 + $0xf8] sm:$0xff] %v362
        %715 = vst [vmem:[%s142 + $0x100] sm:$0xff] %v363
        %716 = vst [vmem:[%s142 + $0x108] sm:$0xff] %v364
        %717 = vst [vmem:[%s142 + $0x110] sm:$0xff] %v365
        %718 = vst [vmem:[%s142 + $0x118] sm:$0xff] %v366
        %719 = vst [vmem:[%s142 + $0x120] sm:$0xff] %v367
        %720 = vst [vmem:[%s142 + $0x128] sm:$0xff] %v368
        %721 = vst [vmem:[%s142 + $0x130] sm:$0xff] %v369
        %722 = vst [vmem:[%s142 + $0x138] sm:$0xff] %v370
        %723 = vst [vmem:[%s142 + $0x140] sm:$0xff] %v371
        %724 = vst [vmem:[%s142 + $0x148] sm:$0xff] %v372
        %725 = vst [vmem:[%s142 + $0x150] sm:$0xff] %v373
        %726 = vst [vmem:[%s142 + $0x158] sm:$0xff] %v374
        %727 = vst [vmem:[%s142 + $0x160] sm:$0xff] %v375
        %728 = vst [vmem:[%s142 + $0x168] sm:$0xff] %v376
        %729 = vst [vmem:[%s142 + $0x170] sm:$0xff] %v377
        %730 = vst [vmem:[%s142 + $0x178] sm:$0xff] %v378
        %731 = vst [vmem:[%s142 + $0x180] sm:$0xff] %v379
        %732 = vst [vmem:[%s142 + $0x188] sm:$0xff] %v380
        %733 = vst [vmem:[%s142 + $0x190] sm:$0xff] %v381
        %734 = vst [vmem:[%s142 + $0x198] sm:$0xff] %v382
        %735 = vst [vmem:[%s142 + $0x1a0] sm:$0xff] %v383
        %736 = vst [vmem:[%s142 + $0x1a8] sm:$0xff] %v384
        %737 = vst [vmem:[%s142 + $0x1b0] sm:$0xff] %v385
        %738 = vst [vmem:[%s142 + $0x1b8] sm:$0xff] %v386
        %739 = vst [vmem:[%s142 + $0x1c0] sm:$0xff] %v387
        %740 = vst [vmem:[%s142 + $0x1c8] sm:$0xff] %v388
        %741 = vst [vmem:[%s142 + $0x1d0] sm:$0xff] %v389
        %742 = vst [vmem:[%s142 + $0x1d8] sm:$0xff] %v390
        %743 = vst [vmem:[%s142 + $0x1e0] sm:$0xff] %v391
        %744 = vst [vmem:[%s142 + $0x1e8] sm:$0xff] %v392
        %745 = vst [vmem:[%s142 + $0x1f0] sm:$0xff] %v393
        %746 = vst [vmem:[%s142 + $0x1f8] sm:$0xff] %v394
        %747 = vst [vmem:[%s142 + $0x200] sm:$0xff] %v395
        %748 = vst [vmem:[%s142 + $0x208] sm:$0xff] %v396
        %749 = vst [vmem:[%s142 + $0x210] sm:$0xff] %v397
        %750 = vst [vmem:[%s142 + $0x218] sm:$0xff] %v398
        %751 = vst [vmem:[%s142 + $0x220] sm:$0xff] %v399
        %752 = vst [vmem:[%s142 + $0x228] sm:$0xff] %v400
        %753 = vst [vmem:[%s142 + $0x230] sm:$0xff] %v401
        %754 = vst [vmem:[%s142 + $0x238] sm:$0xff] %v402
        %755 = vst [vmem:[%s142 + $0x240] sm:$0xff] %v403
        %756 = vst [vmem:[%s142 + $0x248] sm:$0xff] %v404
        %757 = vst [vmem:[%s142 + $0x250] sm:$0xff] %v405
        %758 = vst [vmem:[%s142 + $0x258] sm:$0xff] %v406
        %759 = vst [vmem:[%s142 + $0x260] sm:$0xff] %v407
        %760 = vst [vmem:[%s142 + $0x268] sm:$0xff] %v408
        %761 = vst [vmem:[%s142 + $0x270] sm:$0xff] %v409
        %762 = vst [vmem:[%s142 + $0x278] sm:$0xff] %v410
        %763 = vst [vmem:[%s142 + $0x280] sm:$0xff] %v411
        %764 = vst [vmem:[%s142 + $0x288] sm:$0xff] %v412
        %765 = vst [vmem:[%s142 + $0x290] sm:$0xff] %v413
        %766 = vst [vmem:[%s142 + $0x298] sm:$0xff] %v414
        %767 = vst [vmem:[%s142 + $0x2a0] sm:$0xff] %v415
        %768 = vst [vmem:[%s142 + $0x2a8] sm:$0xff] %v416
        %769 = vst [vmem:[%s142 + $0x2b0] sm:$0xff] %v417
        %770 = vst [vmem:[%s142 + $0x2b8] sm:$0xff] %v418
        %771 = vst [vmem:[%s142 + $0x2c0] sm:$0xff] %v419
        %772 = vst [vmem:[%s142 + $0x2c8] sm:$0xff] %v420
        %773 = vst [vmem:[%s142 + $0x2d0] sm:$0xff] %v421
        %774 = vst [vmem:[%s142 + $0x2d8] sm:$0xff] %v422
        %775 = vst [vmem:[%s142 + $0x2e0] sm:$0xff] %v423
        %776 = vst [vmem:[%s142 + $0x2e8] sm:$0xff] %v424
        %777 = vst [vmem:[%s142 + $0x2f0] sm:$0xff] %v425
        %778 = vst [vmem:[%s142 + $0x2f8] sm:$0xff] %v426
        %779 = vst [vmem:[%s142 + $0x300] sm:$0xff] %v427
        %780 = vst [vmem:[%s142 + $0x308] sm:$0xff] %v428
        %781 = vst [vmem:[%s142 + $0x310] sm:$0xff] %v429
        %782 = vst [vmem:[%s142 + $0x318] sm:$0xff] %v430
        %783 = vst [vmem:[%s142 + $0x320] sm:$0xff] %v431
        %784 = vst [vmem:[%s142 + $0x328] sm:$0xff] %v432
        %785 = vst [vmem:[%s142 + $0x330] sm:$0xff] %v433
        %786 = vst [vmem:[%s142 + $0x338] sm:$0xff] %v434
        %787 = vst [vmem:[%s142 + $0x340] sm:$0xff] %v435
        %788 = vst [vmem:[%s142 + $0x348] sm:$0xff] %v436
        %789 = vst [vmem:[%s142 + $0x350] sm:$0xff] %v437
        %790 = vst [vmem:[%s142 + $0x358] sm:$0xff] %v438
        %791 = vst [vmem:[%s142 + $0x360] sm:$0xff] %v439
        %792 = vst [vmem:[%s142 + $0x368] sm:$0xff] %v440
        %793 = vst [vmem:[%s142 + $0x370] sm:$0xff] %v441
        %794 = vst [vmem:[%s142 + $0x378] sm:$0xff] %v442
        %795 = vst [vmem:[%s142 + $0x380] sm:$0xff] %v443
        %796 = vst [vmem:[%s142 + $0x388] sm:$0xff] %v444
        %797 = vst [vmem:[%s142 + $0x390] sm:$0xff] %v445
        %798 = vst [vmem:[%s142 + $0x398] sm:$0xff] %v446
        %799 = vst [vmem:[%s142 + $0x3a0] sm:$0xff] %v447
        %800 = vst [vmem:[%s142 + $0x3a8] sm:$0xff] %v448
        %801 = vst [vmem:[%s142 + $0x3b0] sm:$0xff] %v449
        %802 = vst [vmem:[%s142 + $0x3b8] sm:$0xff] %v450
        %803 = vst [vmem:[%s142 + $0x3c0] sm:$0xff] %v451
        %804 = vst [vmem:[%s142 + $0x3c8] sm:$0xff] %v452
        %805 = vst [vmem:[%s142 + $0x3d0] sm:$0xff] %v453
        %806 = vst [vmem:[%s142 + $0x3d8] sm:$0xff] %v454
        %807 = vst [vmem:[%s142 + $0x3e0] sm:$0xff] %v455
        %808 = vst [vmem:[%s142 + $0x3e8] sm:$0xff] %v456
        %809 = vst [vmem:[%s142 + $0x3f0] sm:$0xff] %v457
        %810 = vst [vmem:[%s142 + $0x3f8] sm:$0xff] %v458
        %811 = vst [vmem:[%s142 + $0x400] sm:$0xff] %v459
        %812 = vst [vmem:[%s142 + $0x408] sm:$0xff] %v460
        %813 = vst [vmem:[%s142 + $0x410] sm:$0xff] %v461
        %814 = vst [vmem:[%s142 + $0x418] sm:$0xff] %v462
        %815 = vst [vmem:[%s142 + $0x420] sm:$0xff] %v463
        %816 = vst [vmem:[%s142 + $0x428] sm:$0xff] %v464
        %817 = vst [vmem:[%s142 + $0x430] sm:$0xff] %v465
        %818 = vst [vmem:[%s142 + $0x438] sm:$0xff] %v466
        %819 = vst [vmem:[%s142 + $0x440] sm:$0xff] %v467
        %820 = vst [vmem:[%s142 + $0x448] sm:$0xff] %v468
        %821 = vst [vmem:[%s142 + $0x450] sm:$0xff] %v469
        %822 = vst [vmem:[%s142 + $0x458] sm:$0xff] %v470
        %823 = vst [vmem:[%s142 + $0x460] sm:$0xff] %v471
        %824 = vst [vmem:[%s142 + $0x468] sm:$0xff] %v472
        %825 = vst [vmem:[%s142 + $0x470] sm:$0xff] %v473
        %826 = vst [vmem:[%s142 + $0x478] sm:$0xff] %v474
        %827 = vst [vmem:[%s142 + $0x480] sm:$0xff] %v475
        %828 = vst [vmem:[%s142 + $0x488] sm:$0xff] %v476
        %829 = vst [vmem:[%s142 + $0x490] sm:$0xff] %v477
        %830 = vst [vmem:[%s142 + $0x498] sm:$0xff] %v478
        %831 = vst [vmem:[%s142 + $0x4a0] sm:$0xff] %v479
        %832 = vst [vmem:[%s142 + $0x4a8] sm:$0xff] %v480
        %833 = vst [vmem:[%s142 + $0x4b0] sm:$0xff] %v481
        %834 = vst [vmem:[%s142 + $0x4b8] sm:$0xff] %v482
        %835 = vst [vmem:[%s142 + $0x4c0] sm:$0xff] %v483
        %836 = vst [vmem:[%s142 + $0x4c8] sm:$0xff] %v484
        %837 = vst [vmem:[%s142 + $0x4d0] sm:$0xff] %v485
        %838 = vst [vmem:[%s142 + $0x4d8] sm:$0xff] %v486
        %839 = vst [vmem:[%s142 + $0x4e0] sm:$0xff] %v487
        %840 = vst [vmem:[%s142 + $0x4e8] sm:$0xff] %v488
        %841 = vst [vmem:[%s142 + $0x4f0] sm:$0xff] %v489
        %842 = vst [vmem:[%s142 + $0x4f8] sm:$0xff] %v490
        %843 = vst [vmem:[%s142 + $0x500] sm:$0xff] %v491
        %844 = vst [vmem:[%s142 + $0x508] sm:$0xff] %v492
        %845 = vst [vmem:[%s142 + $0x510] sm:$0xff] %v493
        %846 = vst [vmem:[%s142 + $0x518] sm:$0xff] %v494
        %847 = vst [vmem:[%s142 + $0x520] sm:$0xff] %v495
        %848 = vst [vmem:[%s142 + $0x528] sm:$0xff] %v496
        %849 = vst [vmem:[%s142 + $0x530] sm:$0xff] %v497
        %850 = vst [vmem:[%s142 + $0x538] sm:$0xff] %v498
        %851 = vst [vmem:[%s142 + $0x540] sm:$0xff] %v499
        %852 = vst [vmem:[%s142 + $0x548] sm:$0xff] %v500
        %853 = vst [vmem:[%s142 + $0x550] sm:$0xff] %v501
        %854 = vst [vmem:[%s142 + $0x558] sm:$0xff] %v502
        %855 = vst [vmem:[%s142 + $0x560] sm:$0xff] %v503
        %856 = vst [vmem:[%s142 + $0x568] sm:$0xff] %v504
        %857 = vst [vmem:[%s142 + $0x570] sm:$0xff] %v505
        %858 = vst [vmem:[%s142 + $0x578] sm:$0xff] %v506
        %859 = vst [vmem:[%s142 + $0x580] sm:$0xff] %v507
        %860 = vst [vmem:[%s142 + $0x588] sm:$0xff] %v508
        %861 = vst [vmem:[%s142 + $0x590] sm:$0xff] %v509
        %862 = vst [vmem:[%s142 + $0x598] sm:$0xff] %v510
        %863 = vst [vmem:[%s142 + $0x5a0] sm:$0xff] %v511
        %864 = vst [vmem:[%s142 + $0x5a8] sm:$0xff] %v512
        %865 = vst [vmem:[%s142 + $0x5b0] sm:$0xff] %v513
        %866 = vst [vmem:[%s142 + $0x5b8] sm:$0xff] %v514
        %867 = vst [vmem:[%s142 + $0x5c0] sm:$0xff] %v515
        %868 = vst [vmem:[%s142 + $0x5c8] sm:$0xff] %v516
        %869 = vst [vmem:[%s142 + $0x5d0] sm:$0xff] %v517
        %870 = vst [vmem:[%s142 + $0x5d8] sm:$0xff] %v518
        %871 = vst [vmem:[%s142 + $0x5e0] sm:$0xff] %v519
        %872 = vst [vmem:[%s142 + $0x5e8] sm:$0xff] %v520
        %873 = vst [vmem:[%s142 + $0x5f0] sm:$0xff] %v521
        %874 = vst [vmem:[%s142 + $0x5f8] sm:$0xff] %v522
        %875 = vst [vmem:[%s142 + $0x600] sm:$0xff] %v523
        %876 = vst [vmem:[%s142 + $0x608] sm:$0xff] %v524
        %877 = vst [vmem:[%s142 + $0x610] sm:$0xff] %v525
        %878 = vst [vmem:[%s142 + $0x618] sm:$0xff] %v526
        %879 = vst [vmem:[%s142 + $0x620] sm:$0xff] %v527
        %880 = vst [vmem:[%s142 + $0x628] sm:$0xff] %v528
        %881 = vst [vmem:[%s142 + $0x630] sm:$0xff] %v529
        %882 = vst [vmem:[%s142 + $0x638] sm:$0xff] %v530
        %883 = vst [vmem:[%s142 + $0x640] sm:$0xff] %v531
        %884 = vst [vmem:[%s142 + $0x648] sm:$0xff] %v532
        %885 = vst [vmem:[%s142 + $0x650] sm:$0xff] %v533
        %886 = vst [vmem:[%s142 + $0x658] sm:$0xff] %v534
        %887 = vst [vmem:[%s142 + $0x660] sm:$0xff] %v535
        %888 = vst [vmem:[%s142 + $0x668] sm:$0xff] %v536
        %889 = vst [vmem:[%s142 + $0x670] sm:$0xff] %v537
        %890 = vst [vmem:[%s142 + $0x678] sm:$0xff] %v538
        %891 = vst [vmem:[%s142 + $0x680] sm:$0xff] %v539
        %892 = vst [vmem:[%s142 + $0x688] sm:$0xff] %v540
        %893 = vst [vmem:[%s142 + $0x690] sm:$0xff] %v541
        %894 = vst [vmem:[%s142 + $0x698] sm:$0xff] %v542
        %895 = vst [vmem:[%s142 + $0x6a0] sm:$0xff] %v543
        %896 = vst [vmem:[%s142 + $0x6a8] sm:$0xff] %v544
        %897 = vst [vmem:[%s142 + $0x6b0] sm:$0xff] %v545
        %898 = vst [vmem:[%s142 + $0x6b8] sm:$0xff] %v546
        %899 = vst [vmem:[%s142 + $0x6c0] sm:$0xff] %v547
        %900 = vst [vmem:[%s142 + $0x6c8] sm:$0xff] %v548
        %901 = vst [vmem:[%s142 + $0x6d0] sm:$0xff] %v549
        %902 = vst [vmem:[%s142 + $0x6d8] sm:$0xff] %v550
        %903 = vst [vmem:[%s142 + $0x6e0] sm:$0xff] %v551
        %904 = vst [vmem:[%s142 + $0x6e8] sm:$0xff] %v552
        %905 = vst [vmem:[%s142 + $0x6f0] sm:$0xff] %v553
        %906 = vst [vmem:[%s142 + $0x6f8] sm:$0xff] %v554
        %907 = vst [vmem:[%s142 + $0x700] sm:$0xff] %v555
        %908 = vst [vmem:[%s142 + $0x708] sm:$0xff] %v556
        %909 = vst [vmem:[%s142 + $0x710] sm:$0xff] %v557
        %910 = vst [vmem:[%s142 + $0x718] sm:$0xff] %v558
        %911 = vst [vmem:[%s142 + $0x720] sm:$0xff] %v559
        %912 = vst [vmem:[%s142 + $0x728] sm:$0xff] %v560
        %913 = vst [vmem:[%s142 + $0x730] sm:$0xff] %v561
        %914 = vst [vmem:[%s142 + $0x738] sm:$0xff] %v562
        %915 = vst [vmem:[%s142 + $0x740] sm:$0xff] %v563
        %916 = vst [vmem:[%s142 + $0x748] sm:$0xff] %v564
        %917 = vst [vmem:[%s142 + $0x750] sm:$0xff] %v565
        %918 = vst [vmem:[%s142 + $0x758] sm:$0xff] %v566
        %919 = vst [vmem:[%s142 + $0x760] sm:$0xff] %v567
        %920 = vst [vmem:[%s142 + $0x768] sm:$0xff] %v568
        %921 = vst [vmem:[%s142 + $0x770] sm:$0xff] %v569
        %922 = vst [vmem:[%s142 + $0x778] sm:$0xff] %v570
        %923 = vst [vmem:[%s142 + $0x780] sm:$0xff] %v571
        %924 = vst [vmem:[%s142 + $0x788] sm:$0xff] %v572
        %925 = vst [vmem:[%s142 + $0x790] sm:$0xff] %v573
        %926 = vst [vmem:[%s142 + $0x798] sm:$0xff] %v574
        %927 = vst [vmem:[%s142 + $0x7a0] sm:$0xff] %v575
        %928 = vst [vmem:[%s142 + $0x7a8] sm:$0xff] %v576
        %929 = vst [vmem:[%s142 + $0x7b0] sm:$0xff] %v577
        %930 = vst [vmem:[%s142 + $0x7b8] sm:$0xff] %v578
        %931 = vst [vmem:[%s142 + $0x7c0] sm:$0xff] %v579
        %932 = vst [vmem:[%s142 + $0x7c8] sm:$0xff] %v580
        %933 = vst [vmem:[%s142 + $0x7d0] sm:$0xff] %v581
        %934 = vst [vmem:[%s142 + $0x7d8] sm:$0xff] %v582
        %935 = vst [vmem:[%s142 + $0x7e0] sm:$0xff] %v583
        %936 = vst [vmem:[%s142 + $0x7e8] sm:$0xff] %v584
        %937 = vst [vmem:[%s142 + $0x7f0] sm:$0xff] %v585
        %938 = vst [vmem:[%s142 + $0x7f8] sm:$0xff] %v586
        %939 = vst [vmem:[%s142 + $0x800] sm:$0xff] %v587
        %940 = vst [vmem:[%s142 + $0x808] sm:$0xff] %v588
        %941 = vst [vmem:[%s142 + $0x810] sm:$0xff] %v589
        %942 = vst [vmem:[%s142 + $0x818] sm:$0xff] %v590
        %943 = vst [vmem:[%s142 + $0x820] sm:$0xff] %v591
        %944 = vst [vmem:[%s142 + $0x828] sm:$0xff] %v592
        %945 = vst [vmem:[%s142 + $0x830] sm:$0xff] %v593
        %946 = vst [vmem:[%s142 + $0x838] sm:$0xff] %v594
        %947 = vst [vmem:[%s142 + $0x840] sm:$0xff] %v595
        %948 = vst [vmem:[%s142 + $0x848] sm:$0xff] %v596
        %949 = vst [vmem:[%s142 + $0x850] sm:$0xff] %v597
        %950 = vst [vmem:[%s142 + $0x858] sm:$0xff] %v598
        %951 = vst [vmem:[%s142 + $0x860] sm:$0xff] %v599
        %952 = vst [vmem:[%s142 + $0x868] sm:$0xff] %v600
        %953 = vst [vmem:[%s142 + $0x870] sm:$0xff] %v601
        %954 = vst [vmem:[%s142 + $0x878] sm:$0xff] %v602
        %955 = vst [vmem:[%s142 + $0x880] sm:$0xff] %v603
        %956 = vst [vmem:[%s142 + $0x888] sm:$0xff] %v604
        %957 = vst [vmem:[%s142 + $0x890] sm:$0xff] %v605
        %958 = vst [vmem:[%s142 + $0x898] sm:$0xff] %v606
        %959 = vst [vmem:[%s142 + $0x8a0] sm:$0xff] %v607
        %960 = vst [vmem:[%s142 + $0x8a8] sm:$0xff] %v608
        %961 = vst [vmem:[%s142 + $0x8b0] sm:$0xff] %v609
        %962 = vst [vmem:[%s142 + $0x8b8] sm:$0xff] %v610
        %963 = vst [vmem:[%s142 + $0x8c0] sm:$0xff] %v611
        %964 = vst [vmem:[%s142 + $0x8c8] sm:$0xff] %v612
        %965 = vst [vmem:[%s142 + $0x8d0] sm:$0xff] %v613
        %966 = vst [vmem:[%s142 + $0x8d8] sm:$0xff] %v614
        %967 = vst [vmem:[%s142 + $0x8e0] sm:$0xff] %v615
        %968 = vst [vmem:[%s142 + $0x8e8] sm:$0xff] %v616
        %969 = vst [vmem:[%s142 + $0x8f0] sm:$0xff] %v617
        %970 = vst [vmem:[%s142 + $0x8f8] sm:$0xff] %v618
        %971 = vst [vmem:[%s142 + $0x900] sm:$0xff] %v619
        %972 = vst [vmem:[%s142 + $0x908] sm:$0xff] %v620
        %973 = vst [vmem:[%s142 + $0x910] sm:$0xff] %v621
        %974 = vst [vmem:[%s142 + $0x918] sm:$0xff] %v622
        %975 = vst [vmem:[%s142 + $0x920] sm:$0xff] %v623
        %976 = vst [vmem:[%s142 + $0x928] sm:$0xff] %v624
        %977 = vst [vmem:[%s142 + $0x930] sm:$0xff] %v625
        %978 = vst [vmem:[%s142 + $0x938] sm:$0xff] %v626
        %979 = vst [vmem:[%s142 + $0x940] sm:$0xff] %v627
        %980 = vst [vmem:[%s142 + $0x948] sm:$0xff] %v628
        %981 = vst [vmem:[%s142 + $0x950] sm:$0xff] %v629
        %982 = vst [vmem:[%s142 + $0x958] sm:$0xff] %v630
        %983 = vst [vmem:[%s142 + $0x960] sm:$0xff] %v631
        %984 = vst [vmem:[%s142 + $0x968] sm:$0xff] %v632
        %985 = vst [vmem:[%s142 + $0x970] sm:$0xff] %v633
        %986 = vst [vmem:[%s142 + $0x978] sm:$0xff] %v634
        %987 = vst [vmem:[%s142 + $0x980] sm:$0xff] %v635
        %988 = vst [vmem:[%s142 + $0x988] sm:$0xff] %v636
        %989 = vst [vmem:[%s142 + $0x990] sm:$0xff] %v637
        %990 = vst [vmem:[%s142 + $0x998] sm:$0xff] %v638
        %991 = vst [vmem:[%s142 + $0x9a0] sm:$0xff] %v639
        %992 = vst [vmem:[%s142 + $0x9a8] sm:$0xff] %v640
        %993 = vst [vmem:[%s142 + $0x9b0] sm:$0xff] %v641
        %994 = vst [vmem:[%s142 + $0x9b8] sm:$0xff] %v642
        %995 = vst [vmem:[%s142 + $0x9c0] sm:$0xff] %v643
        %996 = vst [vmem:[%s142 + $0x9c8] sm:$0xff] %v644
        %997 = vst [vmem:[%s142 + $0x9d0] sm:$0xff] %v645
        %998 = vst [vmem:[%s142 + $0x9d8] sm:$0xff] %v646
        %999 = vst [vmem:[%s142 + $0x9e0] sm:$0xff] %v647
        %1000 = vst [vmem:[%s142 + $0x9e8] sm:$0xff] %v648
        %1001 = vst [vmem:[%s142 + $0x9f0] sm:$0xff] %v649
        %1002 = vst [vmem:[%s142 + $0x9f8] sm:$0xff] %v650
        %1003 = vst [vmem:[%s142 + $0xa00] sm:$0xff] %v651
        %1004 = vst [vmem:[%s142 + $0xa08] sm:$0xff] %v652
        %1005 = vst [vmem:[%s142 + $0xa10] sm:$0xff] %v653
        %1006 = vst [vmem:[%s142 + $0xa18] sm:$0xff] %v654
        %1007 = vst [vmem:[%s142 + $0xa20] sm:$0xff] %v655
        %1008 = vst [vmem:[%s142 + $0xa28] sm:$0xff] %v656
        %1009 = vst [vmem:[%s142 + $0xa30] sm:$0xff] %v657
        %1010 = vst [vmem:[%s142 + $0xa38] sm:$0xff] %v658
        %1011 = vst [vmem:[%s142 + $0xa40] sm:$0xff] %v659
        %1012 = vst [vmem:[%s142 + $0xa48] sm:$0xff] %v660
        %1013 = vst [vmem:[%s142 + $0xa50] sm:$0xff] %v661
        %1014 = vst [vmem:[%s142 + $0xa58] sm:$0xff] %v662
        %1015 = vst [vmem:[%s142 + $0xa60] sm:$0xff] %v663
        %1016 = vst [vmem:[%s142 + $0xa68] sm:$0xff] %v664
        %1017 = vst [vmem:[%s142 + $0xa70] sm:$0xff] %v665
        %1018 = vst [vmem:[%s142 + $0xa78] sm:$0xff] %v666
        %1019 = vst [vmem:[%s142 + $0xa80] sm:$0xff] %v667
        %1020 = vst [vmem:[%s142 + $0xa88] sm:$0xff] %v668
        %1021 = vst [vmem:[%s142 + $0xa90] sm:$0xff] %v669
        %1022 = vst [vmem:[%s142 + $0xa98] sm:$0xff] %v670
        %1023 = vst [vmem:[%s142 + $0xaa0] sm:$0xff] %v671
        %1024 = vst [vmem:[%s142 + $0xaa8] sm:$0xff] %v672
        %1025 = vst [vmem:[%s142 + $0xab0] sm:$0xff] %v673
        %1026 = vst [vmem:[%s142 + $0xab8] sm:$0xff] %v674
        %1027 = vst [vmem:[%s142 + $0xac0] sm:$0xff] %v675
        %1028 = vst [vmem:[%s142 + $0xac8] sm:$0xff] %v676
        %1029 = vst [vmem:[%s142 + $0xad0] sm:$0xff] %v677
        %1030 = vst [vmem:[%s142 + $0xad8] sm:$0xff] %v678
        %1031 = vst [vmem:[%s142 + $0xae0] sm:$0xff] %v679
        %1032 = vst [vmem:[%s142 + $0xae8] sm:$0xff] %v680
        %1033 = vst [vmem:[%s142 + $0xaf0] sm:$0xff] %v681
        %1034 = vst [vmem:[%s142 + $0xaf8] sm:$0xff] %v682
        %s1035 = sand.u32 %s52, 1
        %s1036 = scalar_lea.sflag [#allocation4], %s1035
        %s1037 = sand.u32 %s52, 1
        %s1038 = smul.addr %s1037, 2816
        %s1039 = scalar_lea.vmem [#allocation5], %s1038
        // Predicated region
        $region29: #{tpu_custom_call.1} parent=23 // pred_check
          %p1040 = pneg %p62
        $region30: #{tpu_custom_call.1} parent=23 // pred_check_branch
          %1042 = sbr.rel (%p1040) target = $region32
        $region31: #{tpu_custom_call.1} parent=23 // pred_region
          %s1043 = smul.u32 44, %s18
          %s1044 = ssub.s32 128, %s1043
          %p1045 = scmp.lt.s32.totalorder %s1044, 44
          %s1046 = scalar_select %p1045, %s1044, 44
          %s1047 = smul.u32 128, %s1046
          %s1048 = smul.u32 %s1047, 8
          %s1050 = ssub.s32 45056, %s1048
          %1051 = vsyncadd %s1036, %s1050
          %p1052 = scmp.ne.s32.totalorder 0, %s1048
          %s1053 = smul.addr %s1043, 8
          %s1054 = smul.addr %s1053, 128
          %s1055 = scalar_lea.hbm %s1, %s1054
          %s1056 = smul.u32 64, %s1046
          %s1057 = sshll.u32 %s1039, 4
          %s1058 = int_to_ptr.vmem [resolvable:$true] %s1057
          %s1059 = sshll.u32 %s1056, 4
          %1063 = dma.vmem_to_hbm [thread:$0]  (%p1052), %s1058, %s1059, %s1055, %s1036, 1024, 1024, 64
        $region32: #{tpu_custom_call.1} parent=23 // pred_fallthru
          _
      $region24: #{tpu_custom_call.1} parent=5 // pred_fallthru
        _
      %p1064 = scmp.le.s32.totalorder 2, %s13
      // Predicated region
      $region33: #{tpu_custom_call.1} parent=5 // pred_check
        %p1065 = pneg %p1064
      $region34: #{tpu_custom_call.1} parent=5 // pred_check_branch
        %1067 = sbr.rel (%p1065) target = $region36
      $region35: #{tpu_custom_call.1} parent=5 // pred_region
        %s1068 = ssub.s32 %s13, 2
        // Predicated region
        $region37: #{tpu_custom_call.1} parent=35 // pred_check
          %p1069 = pneg %p68
        $region38: #{tpu_custom_call.1} parent=35 // pred_check_branch
          %1071 = sbr.rel (%p1069) target = $region40
        $region39: #{tpu_custom_call.1} parent=35 // pred_region
          %s1072 = sand.u32 %s53, 1
          %s1073 = scalar_lea.sflag [#allocation4], %s1072
          %s1074 = sand.u32 %s53, 1
          %s1075 = smul.addr %s1074, 2816
          %s1076 = scalar_lea.vmem [#allocation5], %s1075
          %1077 = dma.done %s1073, 45056
        $region40: #{tpu_custom_call.1} parent=35 // pred_fallthru
          _
      $region36: #{tpu_custom_call.1} parent=5 // pred_fallthru
        _
    $region6: #{tpu_custom_call.1} parent=1 // loop_footer
      %s17 = sadd.s32 1, %s13
    $region7: #{tpu_custom_call.1} parent=1 // loop_footer_branch
      %12 = sbr.rel target = $region3
    $region8: #{tpu_custom_call.1} parent=1 // loop_exit
      _
    %1078 = vsyncpa [#allocation3], 1
    %s1079 = scalar_lea.sflag [#allocation3], 1
    %1080 = vsyncpa %s1079, 1
    %1081 = vsyncpa [#allocation4], 1
    %s1082 = scalar_lea.sflag [#allocation4], 1
    %1083 = vsyncpa %s1082, 1

</llo_original>
